<compile_context>
chip_gen: v7x
topology: tpu7x:2x2x1
jax: 0.10.0
libtpu: 0.0.40
codegen_flags: <defaults>
</compile_context>

<pallas_src>
import functools

import jax
import jax.numpy as jnp
from jax.experimental import pallas as pl
from jax.experimental.pallas import tpu as pltpu

FEAT = 128  # lane-padded feature width (max layer width of the network)


def _round_up(x, m):
    return ((x + m - 1) // m) * m


def _tiles_for(n):
    """Choose (n_pad, tm, tk) for the P @ XW aggregation."""
    if n <= 512:
        n_pad = max(8, _round_up(n, 8))
        return n_pad, n_pad, n_pad          # single tile (small graphs / demo)
    n_pad = _round_up(n, 512)
    return n_pad, 256, 512                  # streamed, double-buffered tiles


def _dropout_mask(key, n_pad, training):
    """Pre-scaled dropout mask: keep w.p. 0.5, scale kept values by 1/(1-p)=2."""
    if training:
        keep = jax.random.bernoulli(key, 0.5, (n_pad, FEAT))
        return keep.astype(jnp.float32) * 2.0
    return jnp.ones((n_pad, FEAT), jnp.float32)


# ----------------------------------------------------------------------------
# Fused kernel: 4 x (GCNConv + ReLU) -> dropout -> Linear
# grid = (4 layers, N_pad/tm row tiles, N_pad/tk reduction tiles)
#   p_ref    : (tm, tk)       bf16 tile of normalized propagation matrix P
#   x_ref    : (N_pad, 128)   f32 padded input features (resident)
#   w_ref    : (4, 128, 128)  bf16 padded conv weights (resident)
#   b_ref    : (4, 1, 128)    f32 padded conv biases (resident)
#   wfc_ref  : (128, 128)     bf16 padded fc weight (resident)
#   bfc_ref  : (1, 128)       f32 padded fc bias (resident)
#   mask_ref : (tm, 128)      f32 pre-scaled dropout mask tile
#   o_ref    : (tm, 128)      f32 padded output rows
#   h_ref    : (N_pad, 128)   f32 VMEM scratch: resident activations
#   xw_ref   : (N_pad, 128)   f32 VMEM scratch: per-layer X @ W (hoisted)
#   acc_ref  : (tm, 128)      f32 VMEM scratch: aggregation accumulator
# ----------------------------------------------------------------------------
def gcnnet_fused_kernel(p_ref, x_ref, w_ref, b_ref, wfc_ref, bfc_ref, mask_ref,
                        o_ref, h_ref, xw_ref, acc_ref, *, tm, tk):
    l = pl.program_id(0)
    i = pl.program_id(1)
    k = pl.program_id(2)
    nk = pl.num_programs(2)

    first_of_layer = jnp.logical_and(i == 0, k == 0)

    # Layer 0: seed the resident activation buffer with the (padded) input X.
    @pl.when(jnp.logical_and(first_of_layer, l == 0))
    def _():
        h_ref[...] = x_ref[...]

    # Hoisted X @ W: compute once per layer into VMEM (not per (i, k) step).
    @pl.when(first_of_layer)
    def _():
        xw_ref[...] = jnp.dot(h_ref[...].astype(jnp.bfloat16), w_ref[l],
                              preferred_element_type=jnp.float32)

    # Aggregation acc += P_tile @ XW_slice  (reduction over k, f32 accumulator).
    @pl.when(k == 0)
    def _():
        acc_ref[...] = jnp.zeros_like(acc_ref)

    k0 = pl.multiple_of(k * tk, tk)
    xw_slice = xw_ref[pl.ds(k0, tk), :].astype(jnp.bfloat16)
    acc_ref[...] += jnp.dot(p_ref[...], xw_slice,
                            preferred_element_type=jnp.float32)

    row0 = pl.multiple_of(i * tm, tm)

    # Finalize the row tile at the last reduction step: conv layers 0..2
    # write relu(P XW + b) back into the resident H scratch.
    @pl.when(jnp.logical_and(k == nk - 1, l < 3))
    def _():
        h_ref[pl.ds(row0, tm), :] = jnp.maximum(acc_ref[...] + b_ref[l], 0.0)

    # Last conv layer: relu -> dropout (pre-scaled mask) -> fc, lane-dense store.
    @pl.when(jnp.logical_and(k == nk - 1, l == 3))
    def _():
        z = jnp.maximum(acc_ref[...] + b_ref[l], 0.0)
        zd = z * mask_ref[...]
        o_ref[...] = (jnp.dot(zd.astype(jnp.bfloat16), wfc_ref[...],
                              preferred_element_type=jnp.float32)
                      + bfc_ref[...])


# ----------------------------------------------------------------------------
# Glue: dense GCN-normalized propagation matrix from edge_index / edge_attr,
# matching torch_geometric GCNConv semantics (self-loops weight 1, symmetric
# deg^-1/2 normalization, P[dst, src] layout so out = P @ x).
# ----------------------------------------------------------------------------
def build_propagation_matrix(edge_index, edge_weight, num_nodes):
    src = edge_index[0]
    dst = edge_index[1]
    a = jnp.zeros((num_nodes, num_nodes), jnp.float32).at[src, dst].add(edge_weight)
    a_hat = a + jnp.eye(num_nodes, dtype=jnp.float32)
    deg = a_hat.sum(axis=0)
    dinv = jnp.where(deg > 0, 1.0 / jnp.sqrt(deg), 0.0)
    return dinv[:, None] * a_hat.T * dinv[None, :]


# ----------------------------------------------------------------------------
# Forward pass: one fused pallas_call.
# ----------------------------------------------------------------------------
def gcnnet_forward(params, x, edge_index, edge_attr, dropout_key, training=True):
    n, fin = x.shape
    out_dim = params["fc"][0].shape[1]

    n_pad, tm, tk = _tiles_for(n)
    n_i = n_pad // tm
    n_k = n_pad // tk

    # P in bf16 (halves HBM traffic of the dominant stream), zero-padded.
    p = build_propagation_matrix(edge_index, edge_attr, n)
    p_pad = (jnp.zeros((n_pad, n_pad), jnp.float32).at[:n, :n].set(p)
             .astype(jnp.bfloat16))

    # Lane-pad X and all parameters to 128 features (zero padding is exact).
    x_pad = jnp.zeros((n_pad, FEAT), jnp.float32).at[:n, :fin].set(x)

    w_stack = jnp.zeros((4, FEAT, FEAT), jnp.float32)
    b_stack = jnp.zeros((4, 1, FEAT), jnp.float32)
    for li, name in enumerate(("conv1", "conv2", "conv3", "conv4")):
        w, b = params[name]
        w_stack = w_stack.at[li, :w.shape[0], :w.shape[1]].set(w)
        b_stack = b_stack.at[li, 0, :b.shape[-1]].set(b.reshape(-1))
    w_stack = w_stack.astype(jnp.bfloat16)

    w_fc, b_fc = params["fc"]
    wfc_pad = (jnp.zeros((FEAT, FEAT), jnp.float32).at[:, :out_dim].set(w_fc)
               .astype(jnp.bfloat16))
    bfc_pad = jnp.zeros((1, FEAT), jnp.float32).at[0, :out_dim].set(b_fc.reshape(-1))

    # TODO(synk): no eval/train switch inside the kernel; the mask is computed
    # host-side (ones when training=False) and streamed per row tile.
    mask = _dropout_mask(dropout_key, n_pad, training)

    # Cost hint for XLA's scheduler.
    flops = (4 * (2 * n_pad * n_pad * FEAT + 2 * n_pad * FEAT * FEAT)
             + 2 * n_pad * FEAT * FEAT)
    bytes_accessed = (4 * n_pad * n_pad * 2          # P streamed once per layer (bf16)
                      + 2 * n_pad * FEAT * 4         # X in + out
                      + (4 * FEAT * FEAT + FEAT * FEAT) * 2
                      + n_pad * FEAT * 4)            # dropout mask

    # Rough VMEM need; only raise the scoped limit when the default would not do.
    vmem_need = (2 * tm * tk * 2 + 2 * n_pad * FEAT * 4 + 2 * 4 * FEAT * FEAT * 2
                 + 2 * FEAT * FEAT * 2 + 4 * tm * FEAT * 4
                 + 2 * n_pad * FEAT * 4 + tm * FEAT * 4)
    compiler_kwargs = dict(
        # Layer and row-tile axes carry a sequential dependency through the
        # resident H scratch -> must stay "arbitrary" (no megacore sharding).
        dimension_semantics=("arbitrary", "arbitrary", "arbitrary"))
    if vmem_need > 28 * 1024 * 1024:
        # TODO(synk): on v7x (64 MiB physical VMEM) shrink tm/tk instead of
        # raising the limit far beyond ~48 MiB.
        compiler_kwargs["vmem_limit_bytes"] = int(min(vmem_need * 5 // 4,
                                                      96 * 1024 * 1024))

    kernel = functools.partial(gcnnet_fused_kernel, tm=tm, tk=tk)

    out_pad = pl.pallas_call(
        kernel,
        out_shape=jax.ShapeDtypeStruct((n_pad, FEAT), jnp.float32),
        grid_spec=pltpu.PrefetchScalarGridSpec(
            num_scalar_prefetch=0,
            grid=(4, n_i, n_k),
            in_specs=[
                pl.BlockSpec((tm, tk), lambda l, i, k: (i, k)),          # P tile
                pl.BlockSpec((n_pad, FEAT), lambda l, i, k: (0, 0)),     # X
                pl.BlockSpec((4, FEAT, FEAT), lambda l, i, k: (0, 0, 0)),  # conv W
                pl.BlockSpec((4, 1, FEAT), lambda l, i, k: (0, 0, 0)),   # conv b
                pl.BlockSpec((FEAT, FEAT), lambda l, i, k: (0, 0)),      # fc W
                pl.BlockSpec((1, FEAT), lambda l, i, k: (0, 0)),         # fc b
                pl.BlockSpec((tm, FEAT), lambda l, i, k: (i, 0)),        # dropout mask
            ],
            out_specs=pl.BlockSpec((tm, FEAT), lambda l, i, k: (i, 0)),
            scratch_shapes=[
                pltpu.VMEM((n_pad, FEAT), jnp.float32),   # H (resident activations)
                pltpu.VMEM((n_pad, FEAT), jnp.float32),   # XW (hoisted per layer)
                pltpu.VMEM((tm, FEAT), jnp.float32),      # accumulator
            ],
        ),
        compiler_params=pltpu.CompilerParams(**compiler_kwargs),
        cost_estimate=pl.CostEstimate(flops=flops, transcendentals=0,
                                      bytes_accessed=bytes_accessed),
    )(p_pad, x_pad, w_stack, b_stack, wfc_pad, bfc_pad, mask)

    return out_pad[:n, :out_dim]


# Pure-JAX reference (same math, f32, same dropout mask) for a sanity check.
def gcnnet_reference(params, x, edge_index, edge_attr, dropout_key, training=True):
    n = x.shape[0]
    n_pad, _, _ = _tiles_for(n)
    p = build_propagation_matrix(edge_index, edge_attr, n)
    h = x
    for name in ("conv1", "conv2", "conv3", "conv4"):
        w, b = params[name]
        h = jnp.maximum(p @ (h @ w) + b, 0.0)
    mask = _dropout_mask(dropout_key, n_pad, training)[:n, :h.shape[1]]
    w_fc, b_fc = params["fc"]
    return (h * mask) @ w_fc + b_fc


def init_params(key, inp_dim, out_dim):
    dims = [(inp_dim, 32), (32, 64), (64, 128), (128, 128)]
    names = ("conv1", "conv2", "conv3", "conv4")
    params = {}
    for name, (fi, fo) in zip(names, dims):
        key, kw = jax.random.split(key)
        scale = 1.0 / jnp.sqrt(jnp.float32(fi))
        params[name] = (jax.random.normal(kw, (fi, fo), jnp.float32) * scale,
                        jnp.zeros((1, fo), jnp.float32))
    key, kw, kb = jax.random.split(key, 3)
    scale = 1.0 / jnp.sqrt(jnp.float32(128))
    params["fc"] = (
        jax.random.normal(kw, (128, out_dim), jnp.float32) * scale,
        jax.random.uniform(kb, (1, out_dim), jnp.float32, -scale, scale),
    )
    return params


if __name__ == "__main__":
    key = jax.random.PRNGKey(0)

    N = 16          # number of nodes
    INP_DIM = 4     # input feature dim
    OUT_DIM = 8     # classifier output dim

    key, kx, ke, kw, kdrop = jax.random.split(key, 5)

    # node features
    x = jax.random.normal(kx, (N, INP_DIM), jnp.float32)

    # small undirected graph: bidirectional ring + a few random edges
    ring_src = jnp.arange(N, dtype=jnp.int32)
    ring_dst = (ring_src + 1) % N
    rand_src = jax.random.randint(ke, (8,), 0, N, dtype=jnp.int32)
    rand_dst = jax.random.randint(jax.random.fold_in(ke, 1), (8,), 0, N,
                                  dtype=jnp.int32)
    src = jnp.concatenate([ring_src, ring_dst, rand_src, rand_dst])
    dst = jnp.concatenate([ring_dst, ring_src, rand_dst, rand_src])
    edge_index = jnp.stack([src, dst], axis=0)                       # (2, E)
    edge_attr = jax.random.uniform(kw, (src.shape[0],), jnp.float32, 0.5, 1.5)

    params = init_params(key, INP_DIM, OUT_DIM)

    out = gcnnet_forward(params, x, edge_index, edge_attr, kdrop, training=True)
    out = jax.block_until_ready(out)

    ref = gcnnet_reference(params, x, edge_index, edge_attr, kdrop, training=True)

    assert out.shape == (N, OUT_DIM)
    assert jnp.isfinite(out).all()
    assert jnp.allclose(out, ref, atol=0.15, rtol=0.15), \
        float(jnp.max(jnp.abs(out - ref)))
    print("KERNEL_OK")
</pallas_src>

<mosaic_0001>
module attributes {stable_mosaic.version = 11 : i64} {
  func.func @gcnnet_fused_kernel(%arg0: i32, %arg1: i32, %arg2: i32, %arg3: memref<16x16xbf16, #tpu.memory_space<vmem>>, %arg4: memref<16x128xf32, #tpu.memory_space<vmem>>, %arg5: memref<4x128x128xbf16, #tpu.memory_space<vmem>>, %arg6: memref<4x1x128xf32, #tpu.memory_space<vmem>>, %arg7: memref<128x128xbf16, #tpu.memory_space<vmem>>, %arg8: memref<1x128xf32, #tpu.memory_space<vmem>>, %arg9: memref<16x128xf32, #tpu.memory_space<vmem>>, %arg10: memref<16x128xf32, #tpu.memory_space<vmem>>, %arg11: memref<16x128xf32, #tpu.memory_space<vmem>>, %arg12: memref<16x128xf32, #tpu.memory_space<vmem>>, %arg13: memref<16x128xf32, #tpu.memory_space<vmem>>) attributes {dimension_semantics = [#tpu.dimension_semantics<arbitrary>, #tpu.dimension_semantics<arbitrary>, #tpu.dimension_semantics<arbitrary>], iteration_bounds = array<i64: 4, 1, 1>, scalar_prefetch = 0 : i64, scratch_operands = 3 : i64, tpu.core_type = #tpu.core_type<tc>, window_params = [{transform_indices = @transform_0, window_bounds = array<i64: 16, 16>}, {pipeline_mode = #tpu.pipeline_mode<synchronous>, transform_indices = @transform_1, window_bounds = array<i64: 16, 128>}, {pipeline_mode = #tpu.pipeline_mode<synchronous>, transform_indices = @transform_2, window_bounds = array<i64: 4, 128, 128>}, {pipeline_mode = #tpu.pipeline_mode<synchronous>, transform_indices = @transform_3, window_bounds = array<i64: 4, 1, 128>}, {pipeline_mode = #tpu.pipeline_mode<synchronous>, transform_indices = @transform_4, window_bounds = array<i64: 128, 128>}, {pipeline_mode = #tpu.pipeline_mode<synchronous>, transform_indices = @transform_5, window_bounds = array<i64: 1, 128>}, {transform_indices = @transform_6, window_bounds = array<i64: 16, 128>}, {transform_indices = @transform_7, window_bounds = array<i64: 16, 128>}]} {
    %c0_i32 = arith.constant 0 : i32
    %0 = arith.cmpi eq, %arg1, %c0_i32 : i32
    %c0_i32_0 = arith.constant 0 : i32
    %1 = arith.cmpi eq, %arg2, %c0_i32_0 : i32
    %2 = arith.andi %0, %1 : i1
    %c0_i32_1 = arith.constant 0 : i32
    %3 = arith.cmpi eq, %arg0, %c0_i32_1 : i32
    %4 = arith.andi %2, %3 : i1
    %5 = arith.extui %4 : i1 to i32
    %c0_i32_2 = arith.constant 0 : i32
    %6 = arith.cmpi ne, %5, %c0_i32_2 : i32
    scf.if %6 {
      %c0_18 = arith.constant 0 : index
      %c0_19 = arith.constant 0 : index
      %34 = vector.load %arg4[%c0_18, %c0_19] : memref<16x128xf32, #tpu.memory_space<vmem>>, vector<16x128xf32>
      %c0_20 = arith.constant 0 : index
      %c0_21 = arith.constant 0 : index
      %35 = vector.load %arg11[%c0_20, %c0_21] : memref<16x128xf32, #tpu.memory_space<vmem>>, vector<16x128xf32>
      tpu.vector_store %arg11[%c0_20, %c0_21], %34 {strides = array<i32>} : memref<16x128xf32, #tpu.memory_space<vmem>>, vector<16x128xf32>,
    } else {
    }
    %7 = arith.extui %2 : i1 to i32
    %c0_i32_3 = arith.constant 0 : i32
    %8 = arith.cmpi ne, %7, %c0_i32_3 : i32
    scf.if %8 {
      %c0_18 = arith.constant 0 : index
      %c0_19 = arith.constant 0 : index
      %34 = vector.load %arg11[%c0_18, %c0_19] : memref<16x128xf32, #tpu.memory_space<vmem>>, vector<16x128xf32>
      %35 = arith.truncf %34 : vector<16x128xf32> to vector<16x128xbf16>
      %36 = arith.index_cast %arg0 : i32 to index
      %c0_20 = arith.constant 0 : index
      %c0_21 = arith.constant 0 : index
      %37 = vector.load %arg5[%36, %c0_20, %c0_21] : memref<4x128x128xbf16, #tpu.memory_space<vmem>>, vector<1x128x128xbf16>
      %38 = vector.shape_cast %37 : vector<1x128x128xbf16> to vector<128x128xbf16>
      %cst_22 = arith.constant dense<0.000000e+00> : vector<16x128xf32>
      %39 = tpu.matmul %35, %38, %cst_22 {dimension_numbers = #tpu.dot_dimension_numbers<[1], [0], [0], [1], [0, 0, 1, 1], [], []>} : vector<16x128xbf16>, vector<128x128xbf16>, vector<16x128xf32> -> vector<16x128xf32>
      %c0_23 = arith.constant 0 : index
      %c0_24 = arith.constant 0 : index
      %40 = vector.load %arg12[%c0_23, %c0_24] : memref<16x128xf32, #tpu.memory_space<vmem>>, vector<16x128xf32>
      tpu.vector_store %arg12[%c0_23, %c0_24], %39 {strides = array<i32>} : memref<16x128xf32, #tpu.memory_space<vmem>>, vector<16x128xf32>,
    } else {
    }
    %c0_i32_4 = arith.constant 0 : i32
    %9 = arith.cmpi eq, %arg2, %c0_i32_4 : i32
    %10 = arith.extui %9 : i1 to i32
    %c0_i32_5 = arith.constant 0 : i32
    %11 = arith.cmpi ne, %10, %c0_i32_5 : i32
    scf.if %11 {
      %cst_18 = arith.constant 0.000000e+00 : f32
      %34 = vector.broadcast %cst_18 : f32 to vector<16x128xf32>
      %c0_19 = arith.constant 0 : index
      %c0_20 = arith.constant 0 : index
      %35 = vector.load %arg13[%c0_19, %c0_20] : memref<16x128xf32, #tpu.memory_space<vmem>>, vector<16x128xf32>
      tpu.vector_store %arg13[%c0_19, %c0_20], %34 {strides = array<i32>} : memref<16x128xf32, #tpu.memory_space<vmem>>, vector<16x128xf32>,
    } else {
    }
    %c16_i32 = arith.constant 16 : i32
    %12 = arith.muli %arg2, %c16_i32 : i32
    %13 = tpu.assume_multiple %12, 16 : i32
    %14 = arith.index_cast %13 : i32 to index
    %c0 = arith.constant 0 : index
    %15 = vector.load %arg12[%14, %c0] : memref<16x128xf32, #tpu.memory_space<vmem>>, vector<16x128xf32>
    %16 = arith.truncf %15 : vector<16x128xf32> to vector<16x128xbf16>
    %c0_6 = arith.constant 0 : index
    %c0_7 = arith.constant 0 : index
    %17 = vector.load %arg13[%c0_6, %c0_7] : memref<16x128xf32, #tpu.memory_space<vmem>>, vector<16x128xf32>
    %c0_8 = arith.constant 0 : index
    %c0_9 = arith.constant 0 : index
    %18 = vector.load %arg3[%c0_8, %c0_9] : memref<16x16xbf16, #tpu.memory_space<vmem>>, vector<16x16xbf16>
    %cst = arith.constant dense<0.000000e+00> : vector<16x128xf32>
    %19 = tpu.matmul %18, %16, %cst {dimension_numbers = #tpu.dot_dimension_numbers<[1], [0], [0], [1], [0, 0, 1, 1], [], []>} : vector<16x16xbf16>, vector<16x128xbf16>, vector<16x128xf32> -> vector<16x128xf32>
    %20 = arith.addf %17, %19 : vector<16x128xf32>
    %c0_10 = arith.constant 0 : index
    %c0_11 = arith.constant 0 : index
    %21 = vector.load %arg13[%c0_10, %c0_11] : memref<16x128xf32, #tpu.memory_space<vmem>>, vector<16x128xf32>
    tpu.vector_store %arg13[%c0_10, %c0_11], %20 {strides = array<i32>} : memref<16x128xf32, #tpu.memory_space<vmem>>, vector<16x128xf32>,
    %c16_i32_12 = arith.constant 16 : i32
    %22 = arith.muli %arg1, %c16_i32_12 : i32
    %23 = tpu.assume_multiple %22, 16 : i32
    %c0_i32_13 = arith.constant 0 : i32
    %24 = arith.cmpi eq, %arg2, %c0_i32_13 : i32
    %c3_i32 = arith.constant 3 : i32
    %25 = arith.cmpi slt, %arg0, %c3_i32 : i32
    %26 = arith.andi %24, %25 : i1
    %27 = arith.extui %26 : i1 to i32
    %c0_i32_14 = arith.constant 0 : i32
    %28 = arith.cmpi ne, %27, %c0_i32_14 : i32
    scf.if %28 {
      %c0_18 = arith.constant 0 : index
      %c0_19 = arith.constant 0 : index
      %34 = vector.load %arg13[%c0_18, %c0_19] : memref<16x128xf32, #tpu.memory_space<vmem>>, vector<16x128xf32>
      %35 = arith.index_cast %arg0 : i32 to index
      %c0_20 = arith.constant 0 : index
      %c0_21 = arith.constant 0 : index
      %36 = vector.load %arg6[%35, %c0_20, %c0_21] : memref<4x1x128xf32, #tpu.memory_space<vmem>>, vector<1x1x128xf32>
      %37 = vector.shape_cast %36 : vector<1x1x128xf32> to vector<1x128xf32>
      %38 = vector.broadcast %37 : vector<1x128xf32> to vector<16x128xf32>
      %39 = arith.addf %34, %38 : vector<16x128xf32>
      %cst_22 = arith.constant 0.000000e+00 : f32
      %40 = vector.broadcast %cst_22 : f32 to vector<16x128xf32>
      %41 = arith.maximumf %39, %40 : vector<16x128xf32>
      %42 = arith.index_cast %23 : i32 to index
      %c0_23 = arith.constant 0 : index
      %43 = vector.load %arg11[%42, %c0_23] : memref<16x128xf32, #tpu.memory_space<vmem>>, vector<16x128xf32>
      tpu.vector_store %arg11[%42, %c0_23], %41 {strides = array<i32>} : memref<16x128xf32, #tpu.memory_space<vmem>>, vector<16x128xf32>,
    } else {
    }
    %c0_i32_15 = arith.constant 0 : i32
    %29 = arith.cmpi eq, %arg2, %c0_i32_15 : i32
    %c3_i32_16 = arith.constant 3 : i32
    %30 = arith.cmpi eq, %arg0, %c3_i32_16 : i32
    %31 = arith.andi %29, %30 : i1
    %32 = arith.extui %31 : i1 to i32
    %c0_i32_17 = arith.constant 0 : i32
    %33 = arith.cmpi ne, %32, %c0_i32_17 : i32
    scf.if %33 {
      %c0_18 = arith.constant 0 : index
      %c0_19 = arith.constant 0 : index
      %34 = vector.load %arg13[%c0_18, %c0_19] : memref<16x128xf32, #tpu.memory_space<vmem>>, vector<16x128xf32>
      %35 = arith.index_cast %arg0 : i32 to index
      %c0_20 = arith.constant 0 : index
      %c0_21 = arith.constant 0 : index
      %36 = vector.load %arg6[%35, %c0_20, %c0_21] : memref<4x1x128xf32, #tpu.memory_space<vmem>>, vector<1x1x128xf32>
      %37 = vector.shape_cast %36 : vector<1x1x128xf32> to vector<1x128xf32>
      %38 = vector.broadcast %37 : vector<1x128xf32> to vector<16x128xf32>
      %39 = arith.addf %34, %38 : vector<16x128xf32>
      %cst_22 = arith.constant 0.000000e+00 : f32
      %40 = vector.broadcast %cst_22 : f32 to vector<16x128xf32>
      %41 = arith.maximumf %39, %40 : vector<16x128xf32>
      %c0_23 = arith.constant 0 : index
      %c0_24 = arith.constant 0 : index
      %42 = vector.load %arg9[%c0_23, %c0_24] : memref<16x128xf32, #tpu.memory_space<vmem>>, vector<16x128xf32>
      %43 = arith.mulf %41, %42 : vector<16x128xf32>
      %44 = arith.truncf %43 : vector<16x128xf32> to vector<16x128xbf16>
      %c0_25 = arith.constant 0 : index
      %c0_26 = arith.constant 0 : index
      %45 = vector.load %arg7[%c0_25, %c0_26] : memref<128x128xbf16, #tpu.memory_space<vmem>>, vector<128x128xbf16>
      %cst_27 = arith.constant dense<0.000000e+00> : vector<16x128xf32>
      %46 = tpu.matmul %44, %45, %cst_27 {dimension_numbers = #tpu.dot_dimension_numbers<[1], [0], [0], [1], [0, 0, 1, 1], [], []>} : vector<16x128xbf16>, vector<128x128xbf16>, vector<16x128xf32> -> vector<16x128xf32>
      %c0_28 = arith.constant 0 : index
      %c0_29 = arith.constant 0 : index
      %47 = vector.load %arg8[%c0_28, %c0_29] : memref<1x128xf32, #tpu.memory_space<vmem>>, vector<1x128xf32>
      %48 = vector.broadcast %47 : vector<1x128xf32> to vector<16x128xf32>
      %49 = arith.addf %46, %48 : vector<16x128xf32>
      %c0_30 = arith.constant 0 : index
      %c0_31 = arith.constant 0 : index
      %50 = vector.load %arg10[%c0_30, %c0_31] : memref<16x128xf32, #tpu.memory_space<vmem>>, vector<16x128xf32>
      tpu.vector_store %arg10[%c0_30, %c0_31], %49 {strides = array<i32>} : memref<16x128xf32, #tpu.memory_space<vmem>>, vector<16x128xf32>,
    } else {
    }
    return
  }
  func.func @transform_0(%arg0: i32, %arg1: i32, %arg2: i32) -> (i32, i32) {
    %c0_i32 = arith.constant 0 : i32
    return %arg1, %arg2 : i32, i32
  }
  func.func @transform_1(%arg0: i32, %arg1: i32, %arg2: i32) -> (i32, i32) {
    %c0_i32 = arith.constant 0 : i32
    %c0_i32_0 = arith.constant 0 : i32
    %c0_i32_1 = arith.constant 0 : i32
    return %c0_i32, %c0_i32_0 : i32, i32
  }
  func.func @transform_2(%arg0: i32, %arg1: i32, %arg2: i32) -> (i32, i32, i32) {
    %c0_i32 = arith.constant 0 : i32
    %c0_i32_0 = arith.constant 0 : i32
    %c0_i32_1 = arith.constant 0 : i32
    %c0_i32_2 = arith.constant 0 : i32
    return %c0_i32, %c0_i32_0, %c0_i32_1 : i32, i32, i32
  }
  func.func @transform_3(%arg0: i32, %arg1: i32, %arg2: i32) -> (i32, i32, i32) {
    %c0_i32 = arith.constant 0 : i32
    %c0_i32_0 = arith.constant 0 : i32
    %c0_i32_1 = arith.constant 0 : i32
    %c0_i32_2 = arith.constant 0 : i32
    return %c0_i32, %c0_i32_0, %c0_i32_1 : i32, i32, i32
  }
  func.func @transform_4(%arg0: i32, %arg1: i32, %arg2: i32) -> (i32, i32) {
    %c0_i32 = arith.constant 0 : i32
    %c0_i32_0 = arith.constant 0 : i32
    %c0_i32_1 = arith.constant 0 : i32
    return %c0_i32, %c0_i32_0 : i32, i32
  }
  func.func @transform_5(%arg0: i32, %arg1: i32, %arg2: i32) -> (i32, i32) {
    %c0_i32 = arith.constant 0 : i32
    %c0_i32_0 = arith.constant 0 : i32
    %c0_i32_1 = arith.constant 0 : i32
    return %c0_i32, %c0_i32_0 : i32, i32
  }
  func.func @transform_6(%arg0: i32, %arg1: i32, %arg2: i32) -> (i32, i32) {
    %c0_i32 = arith.constant 0 : i32
    %c0_i32_0 = arith.constant 0 : i32
    return %arg1, %c0_i32 : i32, i32
  }
  func.func @transform_7(%arg0: i32, %arg1: i32, %arg2: i32) -> (i32, i32) {
    %c0_i32 = arith.constant 0 : i32
    %c0_i32_0 = arith.constant 0 : i32
    return %arg1, %c0_i32 : i32, i32
  }
}

</mosaic_0001>

<llo_original>
// kernel: tpu_custom_call.1
$region0: #{tpu_custom_call.1}
  #allocation0 [shape = 'u32[]', space=smem, size = 0x4, offset = 0x4, fixed_abs, tag = 'smem constant byte address 0x4 - core index']
  #allocation1 [shape = 'u32[144,128]{1,0:T(1,128)}', space=vmem, size = 0x12000, scoped, tag = 'internal scratch']
  #allocation2 [shape = 'f32[16,128]{1,0:T(8,128)}', space=vmem, size = 0x2000, scoped, tag = 'scratch operand']
  #allocation3 [shape = 'f32[16,128]{1,0:T(8,128)}', space=vmem, size = 0x2000, scoped, tag = 'scratch operand']
  #allocation4 [shape = 'f32[16,128]{1,0:T(8,128)}', space=vmem, size = 0x2000, scoped, tag = 'scratch operand']
  %s0 = inlined_call_operand.hbm [shape: bf16[16,16], index: 0, kind: input, shape index: {}]
  %s1 = inlined_call_operand.hbm [shape: f32[16,128], index: 1, kind: input, shape index: {}]
  %s2 = inlined_call_operand.hbm [shape: bf16[4,128,128], index: 2, kind: input, shape index: {}]
  %s3 = inlined_call_operand.vmem [shape: f32[4,1,128], index: 3, kind: input, shape index: {}]
  %s4 = inlined_call_operand.hbm [shape: bf16[128,128], index: 4, kind: input, shape index: {}]
  %s5 = inlined_call_operand.vmem [shape: f32[1,128], index: 5, kind: input, shape index: {}]
  %s6 = inlined_call_operand.vmem [shape: f32[16,128], index: 6, kind: input, shape index: {}]
  %s7 = inlined_call_operand.hbm [shape: f32[16,128], index: 7, kind: output, shape index: {}]
  %s8 = sld [smem:[#allocation0]]
  $region97: #{tpu_custom_call.1} parent=0
    _
  %s10 = ssub.s32 1, %s8
  %s11 = scalar_select 0, %s10, %s8
  $region1: #{tpu_custom_call.1} parent=0
    #allocation5 [shape = 'u8[4096]{0}', space=vmem, size = 0x1000, scoped, tag = 'input window, operand 0, single buffered']
    #allocation6 [shape = 's32[2]{0}', space=sflag, size = 0x8, scoped, tag = 'scoped memory for tpu_custom_call.1']
    #allocation7 [shape = 's32[2]{0}', space=sflag, size = 0x8, scoped, tag = 'scoped memory for tpu_custom_call.1']
    #allocation8 [shape = 'u8[8192]{0}', space=vmem, size = 0x2000, scoped, tag = 'input window, operand 1, single buffered']
    #allocation9 [shape = 's32[1]{0}', space=sflag, size = 0x4, scoped, tag = 'scoped memory for tpu_custom_call.1']
    #allocation10 [shape = 'u8[131072]{0}', space=vmem, size = 0x20000, scoped, tag = 'input window, operand 2, single buffered']
    #allocation11 [shape = 'u8[32768]{0}', space=vmem, size = 0x8000, scoped, tag = 'input window, operand 4, single buffered']
    #allocation12 [shape = 's32[1]{0}', space=sflag, size = 0x4, scoped, tag = 'scoped memory for tpu_custom_call.1']
    #allocation13 [shape = 'u8[8192]{0}', space=vmem, size = 0x2000, scoped, tag = 'output window, operand 0, single buffered']
    %12 = vsyncpa [#allocation6], 0
    %13 = vsyncpa [#allocation9], 0
    %14 = vsyncpa [#allocation12], 0
    %15 = vsyncpa [#allocation7], 0
    loop: start=0, step=1, limit=6
    $region2: #{tpu_custom_call.1} parent=1 // loop_pre_header
      _
    $region3: #{tpu_custom_call.1} parent=1 // loop_header
      %s17 = sphi 0, %s21
      %p18 = scmp.ge.s32.totalorder %s17, 6
      %s24 = sphi 0, %s43
      %s25 = sphi 0, %s39
      %s26 = sphi 0, %s35
      %s27 = sphi 0, %s24
      %s28 = sphi 0, %s25
      %s29 = sphi 0, %s26
      %s30 = sphi 0, %s27
      %s31 = sphi 0, %s28
      %s32 = sphi 0, %s29
      %s48 = sphi 0, %s50
      %s51 = sphi 0, %s48
      %s52 = sphi 0, %s51
      %s68 = sphi 0, %s52
      %s72 = sphi 0, %s72
      %s74 = sphi 0, %s72
      %s75 = sphi 0, %s74
      %s89 = sphi 0, %s75
      %s93 = sphi 0, %s93
      %s95 = sphi 0, %s93
      %s96 = sphi 0, %s95
      %s110 = sphi 0, %s96
      %s114 = sphi 0, %s114
      %s116 = sphi 0, %s114
      %s117 = sphi 0, %s116
      %s131 = sphi 0, %s117
      %s135 = sphi 0, %s135
      %s137 = sphi 0, %s135
      %s138 = sphi 0, %s137
      %s152 = sphi 0, %s138
      %s156 = sphi 0, %s156
      %s158 = sphi 0, %s156
      %s159 = sphi 0, %s158
      %s173 = sphi 0, %s159
      %s179 = sphi 0, %s181
      %s182 = sphi 0, %s179
      %s183 = sphi 0, %s182
      %s199 = sphi 0, %s183
      %s205 = sphi 0, %s207
      %s208 = sphi 0, %s205
      %s209 = sphi 0, %s208
      %s225 = sphi 0, %s209
    $region4: #{tpu_custom_call.1} parent=1 // loop_header_branch
      %20 = sbr.rel (%p18) target = $region8
    $region5: #{tpu_custom_call.1} parent=1 // loop_body
      %s22 = ssub.s32 %s17, 1
      %s23 = ssub.s32 %s17, 2
      %s33 = sadd.s32 1, %s26
      %p34 = scmp.ge.s32.totalorder %s33, 1
      %s35 = scalar_select %p34, 0, %s33
      %s36 = sadd.s32 1, %s25
      %s37 = scalar_select %p34, %s36, %s25
      %p38 = scmp.ge.s32.totalorder %s37, 1
      %s39 = scalar_select %p38, 0, %s37
      %s40 = sadd.s32 1, %s24
      %s41 = scalar_select %p38, %s40, %s24
      %p42 = scmp.ge.s32.totalorder %s41, 4
      %s43 = scalar_select %p42, 0, %s41
      %s44 = ssub.s32 %s25, %s39
      %s45 = ssub.s32 %s26, %s35
      %s46 = sor.u32 %s44, %s45
      %p47 = scmp.eq.s32.totalorder %s46, 0
      %s49 = sadd.s32 %s48, 1
      %s50 = scalar_select %p47, %s48, %s49
      %p53 = pneg %p47
      %p54 = scmp.eq.s32.totalorder %s17, 3
      %p55 = por %p53, %p54
      %p56 = scmp.ne.s32.totalorder %s48, %s51
      %p57 = scmp.eq.s32.totalorder %s17, 0
      %p58 = por %p56, %p57
      %p59 = scmp.ne.s32.totalorder %s48, %s51
      %p60 = scmp.eq.s32.totalorder %s22, 3
      %p61 = por %p59, %p60
      %p62 = scmp.ne.s32.totalorder %s51, %s52
      %p63 = scmp.eq.s32.totalorder %s22, 0
      %p64 = por %p62, %p63
      %p65 = scmp.ne.s32.totalorder %s51, %s52
      %p66 = scmp.eq.s32.totalorder %s23, 3
      %p67 = por %p65, %p66
      %p69 = scmp.ne.s32.totalorder %s52, %s68
      %p70 = scmp.eq.s32.totalorder %s23, 0
      %p71 = por %p69, %p70
      %s73 = sadd.s32 %s72, 1
      %p76 = scmp.eq.s32.totalorder %s17, 3
      %p77 = scmp.ne.s32.totalorder %s72, %s74
      %p78 = scmp.eq.s32.totalorder %s17, 0
      %p79 = por %p77, %p78
      %p80 = scmp.ne.s32.totalorder %s72, %s74
      %p81 = scmp.eq.s32.totalorder %s22, 3
      %p82 = por %p80, %p81
      %p83 = scmp.ne.s32.totalorder %s74, %s75
      %p84 = scmp.eq.s32.totalorder %s22, 0
      %p85 = por %p83, %p84
      %p86 = scmp.ne.s32.totalorder %s74, %s75
      %p87 = scmp.eq.s32.totalorder %s23, 3
      %p88 = por %p86, %p87
      %p90 = scmp.ne.s32.totalorder %s75, %s89
      %p91 = scmp.eq.s32.totalorder %s23, 0
      %p92 = por %p90, %p91
      %s94 = sadd.s32 %s93, 1
      %p97 = scmp.eq.s32.totalorder %s17, 3
      %p98 = scmp.ne.s32.totalorder %s93, %s95
      %p99 = scmp.eq.s32.totalorder %s17, 0
      %p100 = por %p98, %p99
      %p101 = scmp.ne.s32.totalorder %s93, %s95
      %p102 = scmp.eq.s32.totalorder %s22, 3
      %p103 = por %p101, %p102
      %p104 = scmp.ne.s32.totalorder %s95, %s96
      %p105 = scmp.eq.s32.totalorder %s22, 0
      %p106 = por %p104, %p105
      %p107 = scmp.ne.s32.totalorder %s95, %s96
      %p108 = scmp.eq.s32.totalorder %s23, 3
      %p109 = por %p107, %p108
      %p111 = scmp.ne.s32.totalorder %s96, %s110
      %p112 = scmp.eq.s32.totalorder %s23, 0
      %p113 = por %p111, %p112
      %s115 = sadd.s32 %s114, 1
      %p118 = scmp.eq.s32.totalorder %s17, 3
      %p119 = scmp.ne.s32.totalorder %s114, %s116
      %p120 = scmp.eq.s32.totalorder %s17, 0
      %p121 = por %p119, %p120
      %p122 = scmp.ne.s32.totalorder %s114, %s116
      %p123 = scmp.eq.s32.totalorder %s22, 3
      %p124 = por %p122, %p123
      %p125 = scmp.ne.s32.totalorder %s116, %s117
      %p126 = scmp.eq.s32.totalorder %s22, 0
      %p127 = por %p125, %p126
      %p128 = scmp.ne.s32.totalorder %s116, %s117
      %p129 = scmp.eq.s32.totalorder %s23, 3
      %p130 = por %p128, %p129
      %p132 = scmp.ne.s32.totalorder %s117, %s131
      %p133 = scmp.eq.s32.totalorder %s23, 0
      %p134 = por %p132, %p133
      %s136 = sadd.s32 %s135, 1
      %p139 = scmp.eq.s32.totalorder %s17, 3
      %p140 = scmp.ne.s32.totalorder %s135, %s137
      %p141 = scmp.eq.s32.totalorder %s17, 0
      %p142 = por %p140, %p141
      %p143 = scmp.ne.s32.totalorder %s135, %s137
      %p144 = scmp.eq.s32.totalorder %s22, 3
      %p145 = por %p143, %p144
      %p146 = scmp.ne.s32.totalorder %s137, %s138
      %p147 = scmp.eq.s32.totalorder %s22, 0
      %p148 = por %p146, %p147
      %p149 = scmp.ne.s32.totalorder %s137, %s138
      %p150 = scmp.eq.s32.totalorder %s23, 3
      %p151 = por %p149, %p150
      %p153 = scmp.ne.s32.totalorder %s138, %s152
      %p154 = scmp.eq.s32.totalorder %s23, 0
      %p155 = por %p153, %p154
      %s157 = sadd.s32 %s156, 1
      %p160 = scmp.eq.s32.totalorder %s17, 3
      %p161 = scmp.ne.s32.totalorder %s156, %s158
      %p162 = scmp.eq.s32.totalorder %s17, 0
      %p163 = por %p161, %p162
      %p164 = scmp.ne.s32.totalorder %s156, %s158
      %p165 = scmp.eq.s32.totalorder %s22, 3
      %p166 = por %p164, %p165
      %p167 = scmp.ne.s32.totalorder %s158, %s159
      %p168 = scmp.eq.s32.totalorder %s22, 0
      %p169 = por %p167, %p168
      %p170 = scmp.ne.s32.totalorder %s158, %s159
      %p171 = scmp.eq.s32.totalorder %s23, 3
      %p172 = por %p170, %p171
      %p174 = scmp.ne.s32.totalorder %s159, %s173
      %p175 = scmp.eq.s32.totalorder %s23, 0
      %p176 = por %p174, %p175
      %s177 = ssub.s32 %s25, %s39
      %p178 = scmp.eq.s32.totalorder %s177, 0
      %s180 = sadd.s32 %s179, 1
      %s181 = scalar_select %p178, %s179, %s180
      %p184 = pneg %p178
      %p185 = scmp.eq.s32.totalorder %s17, 3
      %p186 = por %p184, %p185
      %p187 = scmp.ne.s32.totalorder %s179, %s182
      %p188 = scmp.eq.s32.totalorder %s17, 0
      %p189 = por %p187, %p188
      %p190 = scmp.ne.s32.totalorder %s179, %s182
      %p191 = scmp.eq.s32.totalorder %s22, 3
      %p192 = por %p190, %p191
      %p193 = scmp.ne.s32.totalorder %s182, %s183
      %p194 = scmp.eq.s32.totalorder %s22, 0
      %p195 = por %p193, %p194
      %p196 = scmp.ne.s32.totalorder %s182, %s183
      %p197 = scmp.eq.s32.totalorder %s23, 3
      %p198 = por %p196, %p197
      %p200 = scmp.ne.s32.totalorder %s183, %s199
      %p201 = scmp.eq.s32.totalorder %s23, 0
      %p202 = por %p200, %p201
      %s203 = ssub.s32 %s25, %s39
      %p204 = scmp.eq.s32.totalorder %s203, 0
      %s206 = sadd.s32 %s205, 1
      %s207 = scalar_select %p204, %s205, %s206
      %p210 = pneg %p204
      %p211 = scmp.eq.s32.totalorder %s17, 3
      %p212 = por %p210, %p211
      %p213 = scmp.ne.s32.totalorder %s205, %s208
      %p214 = scmp.eq.s32.totalorder %s17, 0
      %p215 = por %p213, %p214
      %p216 = scmp.ne.s32.totalorder %s205, %s208
      %p217 = scmp.eq.s32.totalorder %s22, 3
      %p218 = por %p216, %p217
      %p219 = scmp.ne.s32.totalorder %s208, %s209
      %p220 = scmp.eq.s32.totalorder %s22, 0
      %p221 = por %p219, %p220
      %p222 = scmp.ne.s32.totalorder %s208, %s209
      %p223 = scmp.eq.s32.totalorder %s23, 3
      %p224 = por %p222, %p223
      %p226 = scmp.ne.s32.totalorder %s209, %s225
      %p227 = scmp.eq.s32.totalorder %s23, 0
      %p228 = por %p226, %p227
      %p229 = scmp.le.s32.totalorder 1, %s17
      %p230 = scmp.lt.s32.totalorder %s17, 5
      %p231 = pnand %p229, %p230
      %p232 = pneg %p231
      // Predicated region
      $region9: #{tpu_custom_call.1} parent=5 // pred_check
        _
      $region10: #{tpu_custom_call.1} parent=5 // pred_check_branch
        %234 = sbr.rel (%p231) target = $region12
      $region11: #{tpu_custom_call.1} parent=5 // pred_region
        %s235 = ssub.s32 %s17, 1
        // Predicated region
        $region13: #{tpu_custom_call.1} parent=11 // pred_check
          %p236 = pneg %p64
        $region14: #{tpu_custom_call.1} parent=11 // pred_check_branch
          %238 = sbr.rel (%p236) target = $region16
        $region15: #{tpu_custom_call.1} parent=11 // pred_region
          %s239 = smul.u32 2, %s28
          %s241 = ssub.s32 128, 128
          %242 = vsyncadd [#allocation6], %s241
          %s243 = sadd.s32 %s29, %s239
          %s244 = smul.addr %s243, 64
          %s245 = scalar_lea.hbm %s0, %s244
          %s246 = sshll.u32 [#allocation5], 4
          %s247 = int_to_ptr.vmem [resolvable:$true] %s246
          %252 = dma.hbm_to_vmem [thread:$0]  %s245, 128, %s247, [#allocation6], 64, 64, 4
        $region16: #{tpu_custom_call.1} parent=11 // pred_fallthru
          _
        // Predicated region
        $region17: #{tpu_custom_call.1} parent=11 // pred_check
          %p253 = pneg %p85
        $region18: #{tpu_custom_call.1} parent=11 // pred_check_branch
          %255 = sbr.rel (%p253) target = $region20
        $region19: #{tpu_custom_call.1} parent=11 // pred_region
          %s257 = ssub.s32 256, 256
          %258 = vsyncadd [#allocation9], %s257
          %s259 = sshll.u32 [#allocation8], 4
          %s260 = int_to_ptr.vmem [resolvable:$true] %s259
          %265 = dma.hbm_to_vmem [thread:$0]  %s1, 256, %s260, [#allocation9], 128, 128, 8
        $region20: #{tpu_custom_call.1} parent=11 // pred_fallthru
          _
        // Predicated region
        $region21: #{tpu_custom_call.1} parent=11 // pred_check
          %p266 = pneg %p106
        $region22: #{tpu_custom_call.1} parent=11 // pred_check_branch
          %268 = sbr.rel (%p266) target = $region24
        $region23: #{tpu_custom_call.1} parent=11 // pred_region
          %s270 = ssub.s32 4096, 4096
          %271 = vsyncadd [#allocation9], %s270
          %s272 = sshll.u32 [#allocation10], 4
          %s273 = int_to_ptr.vmem [resolvable:$true] %s272
          %278 = dma.hbm_to_vmem [thread:$0]  %s2, 4096, %s273, [#allocation9], 64, 64, 4
        $region24: #{tpu_custom_call.1} parent=11 // pred_fallthru
          _
        // Predicated region
        $region25: #{tpu_custom_call.1} parent=11 // pred_check
          %p279 = pneg %p127
        $region26: #{tpu_custom_call.1} parent=11 // pred_check_branch
          %281 = sbr.rel (%p279) target = $region28
        $region27: #{tpu_custom_call.1} parent=11 // pred_region
          _
        $region28: #{tpu_custom_call.1} parent=11 // pred_fallthru
          _
        // Predicated region
        $region29: #{tpu_custom_call.1} parent=11 // pred_check
          %p282 = pneg %p148
        $region30: #{tpu_custom_call.1} parent=11 // pred_check_branch
          %284 = sbr.rel (%p282) target = $region32
        $region31: #{tpu_custom_call.1} parent=11 // pred_region
          %s286 = ssub.s32 1024, 1024
          %287 = vsyncadd [#allocation12], %s286
          %s288 = sshll.u32 [#allocation11], 4
          %s289 = int_to_ptr.vmem [resolvable:$true] %s288
          %294 = dma.hbm_to_vmem [thread:$0]  %s4, 1024, %s289, [#allocation12], 64, 64, 4
        $region32: #{tpu_custom_call.1} parent=11 // pred_fallthru
          _
        // Predicated region
        $region33: #{tpu_custom_call.1} parent=11 // pred_check
          %p295 = pneg %p169
        $region34: #{tpu_custom_call.1} parent=11 // pred_check_branch
          %297 = sbr.rel (%p295) target = $region36
        $region35: #{tpu_custom_call.1} parent=11 // pred_region
          _
        $region36: #{tpu_custom_call.1} parent=11 // pred_fallthru
          _
        // Predicated region
        $region37: #{tpu_custom_call.1} parent=11 // pred_check
          %p298 = pneg %p195
        $region38: #{tpu_custom_call.1} parent=11 // pred_check_branch
          %300 = sbr.rel (%p298) target = $region40
        $region39: #{tpu_custom_call.1} parent=11 // pred_region
          %s301 = smul.u32 2, %s28
          %p302 = scmp.lt.s32.totalorder %s301, 1
          %s303 = scalar_select %p302, %s301, 1
          %s304 = smul.addr %s303, 8
          %s305 = scalar_lea.vmem %s6, %s304
          %s306 = smul.u32 2, %s28
        $region40: #{tpu_custom_call.1} parent=11 // pred_fallthru
          _
      $region12: #{tpu_custom_call.1} parent=5 // pred_fallthru
        _
      %p307 = scmp.lt.s32.totalorder %s17, 4
      // Predicated region
      $region41: #{tpu_custom_call.1} parent=5 // pred_check
        %p308 = pneg %p307
      $region42: #{tpu_custom_call.1} parent=5 // pred_check_branch
        %310 = sbr.rel (%p308) target = $region44
      $region43: #{tpu_custom_call.1} parent=5 // pred_region
        _
      $region44: #{tpu_custom_call.1} parent=5 // pred_fallthru
        _
      %p311 = scmp.le.s32.totalorder 1, %s17
      %p312 = scmp.lt.s32.totalorder %s17, 5
      %p313 = pnand %p311, %p312
      %p314 = pneg %p313
      // Predicated region
      $region45: #{tpu_custom_call.1} parent=5 // pred_check
        _
      $region46: #{tpu_custom_call.1} parent=5 // pred_check_branch
        %316 = sbr.rel (%p313) target = $region48
      $region47: #{tpu_custom_call.1} parent=5 // pred_region
        %s317 = ssub.s32 %s17, 1
        // Predicated region
        $region49: #{tpu_custom_call.1} parent=47 // pred_check
          %p318 = pneg %p64
        $region50: #{tpu_custom_call.1} parent=47 // pred_check_branch
          %320 = sbr.rel (%p318) target = $region52
        $region51: #{tpu_custom_call.1} parent=47 // pred_region
          %321 = dma.done [#allocation6], 128
        $region52: #{tpu_custom_call.1} parent=47 // pred_fallthru
          _
        // Predicated region
        $region53: #{tpu_custom_call.1} parent=47 // pred_check
          %p322 = pneg %p85
        $region54: #{tpu_custom_call.1} parent=47 // pred_check_branch
          %324 = sbr.rel (%p322) target = $region56
        $region55: #{tpu_custom_call.1} parent=47 // pred_region
          %325 = dma.done [#allocation9], 256
        $region56: #{tpu_custom_call.1} parent=47 // pred_fallthru
          _
        // Predicated region
        $region57: #{tpu_custom_call.1} parent=47 // pred_check
          %p326 = pneg %p106
        $region58: #{tpu_custom_call.1} parent=47 // pred_check_branch
          %328 = sbr.rel (%p326) target = $region60
        $region59: #{tpu_custom_call.1} parent=47 // pred_region
          %329 = dma.done [#allocation9], 4096
        $region60: #{tpu_custom_call.1} parent=47 // pred_fallthru
          _
        // Predicated region
        $region61: #{tpu_custom_call.1} parent=47 // pred_check
          %p330 = pneg %p148
        $region62: #{tpu_custom_call.1} parent=47 // pred_check_branch
          %332 = sbr.rel (%p330) target = $region64
        $region63: #{tpu_custom_call.1} parent=47 // pred_region
          %333 = dma.done [#allocation12], 1024
        $region64: #{tpu_custom_call.1} parent=47 // pred_fallthru
          _
        %p334 = pneg %p64
        %p335 = pneg %p61
        %p336 = pneg %p85
        %p337 = pneg %p82
        %p338 = pneg %p106
        %p339 = pneg %p103
        %p340 = pneg %p127
        %p341 = pneg %p124
        %p342 = pneg %p148
        %p343 = pneg %p145
        %p344 = pneg %p169
        %p345 = pneg %p166
        %s346 = smul.u32 2, %s28
        %p347 = scmp.lt.s32.totalorder %s346, 1
        %s348 = scalar_select %p347, %s346, 1
        %s349 = smul.addr %s348, 8
        %s350 = scalar_lea.vmem %s6, %s349
        %p351 = pneg %p195
        %p352 = pneg %p192
        %p353 = pneg %p221
        %p354 = pneg %p218
        %s355 = smul.u32 2, %s28
        %s356 = smul.u32 2, %s28
        %p357 = scmp.lt.s32.totalorder %s356, 1
        %s358 = scalar_select %p357, %s356, 1
        %s359 = smul.addr %s358, 8
        %s360 = scalar_lea.vmem %s6, %s359
        %s361 = smul.u32 2, %s28
        %s362 = smul.u32 2, %s28
        %p364 = scmp.eq.s32.totalorder %s28, 0
        %p365 = scmp.eq.s32.totalorder %s29, 0
        %p366 = pnand %p364, %p365
        %p367 = pneg %p366
        %p368 = scmp.eq.s32.totalorder %s27, 0
        %p369 = pnand %p367, %p368
        %p370 = pneg %p369
        // Predicated region
        $region65: #{tpu_custom_call.1} parent=47 // pred_check
          _
        $region66: #{tpu_custom_call.1} parent=47 // pred_check_branch
          %372 = sbr.rel (%p369) target = $region68
        $region67: #{tpu_custom_call.1} parent=47 // pred_region
          %v373 = vld [vmem:[#allocation8] sm:$0xff]
          %v374 = vld [vmem:[#allocation8 + $0x8] sm:$0xff]
          %375 = vst [vmem:[#allocation2] sm:$0xff] %v373
          %376 = vst [vmem:[#allocation2 + $0x8] sm:$0xff] %v374
        $region68: #{tpu_custom_call.1} parent=47 // pred_fallthru
          _
        // Predicated region
        $region69: #{tpu_custom_call.1} parent=47 // pred_check
          _
        $region70: #{tpu_custom_call.1} parent=47 // pred_check_branch
          %378 = sbr.rel (%p366) target = $region72
        $region71: #{tpu_custom_call.1} parent=47 // pred_region
          %v379 = vld [vmem:[#allocation2] sm:$0xff]
          %v380 = vld [vmem:[#allocation2 + $0x8] sm:$0xff]
          %v381 = vpack.c.bf16 %v380, %v379
          %s382 = smul.u32 %s27, 16
          %s383 = smul.addr %s382, 4
          %s384 = scalar_lea.vmem [#allocation10], %s383
          %v385 = vld [vmem:[%s384] sm:$0xf]
          %v386 = vld [vmem:[%s384 + $0x4] sm:$0xf]
          %v387 = vld [vmem:[%s384 + $0x8] sm:$0xf]
          %v388 = vld [vmem:[%s384 + $0xc] sm:$0xf]
          %v389 = vld [vmem:[%s384 + $0x10] sm:$0xf]
          %v390 = vld [vmem:[%s384 + $0x14] sm:$0xf]
          %v391 = vld [vmem:[%s384 + $0x18] sm:$0xf]
          %v392 = vld [vmem:[%s384 + $0x1c] sm:$0xf]
          %v393 = vld [vmem:[%s384 + $0x20] sm:$0xf]
          %v394 = vld [vmem:[%s384 + $0x24] sm:$0xf]
          %v395 = vld [vmem:[%s384 + $0x28] sm:$0xf]
          %v396 = vld [vmem:[%s384 + $0x2c] sm:$0xf]
          %v397 = vld [vmem:[%s384 + $0x30] sm:$0xf]
          %v398 = vld [vmem:[%s384 + $0x34] sm:$0xf]
          %v399 = vld [vmem:[%s384 + $0x38] sm:$0xf]
          %v400 = vld [vmem:[%s384 + $0x3c] sm:$0xf]
          %v417 = vunpack.c.l.b16 %v385
          %v418 = vunpack.c.l.b16 %v386
          %v419 = vunpack.c.l.b16 %v387
          %v420 = vunpack.c.l.b16 %v388
          %v421 = vunpack.c.l.b16 %v389
          %v422 = vunpack.c.l.b16 %v390
          %v423 = vunpack.c.l.b16 %v391
          %v424 = vunpack.c.l.b16 %v392
          %v425 = vunpack.c.l.b16 %v393
          %v426 = vunpack.c.l.b16 %v394
          %v427 = vunpack.c.l.b16 %v395
          %v428 = vunpack.c.l.b16 %v396
          %v429 = vunpack.c.l.b16 %v397
          %v430 = vunpack.c.l.b16 %v398
          %v431 = vunpack.c.l.b16 %v399
          %v432 = vunpack.c.l.b16 %v400
          %v433 = vpack.c.b16 %v418, %v417
          %v434 = vpack.c.b16 %v420, %v419
          %v435 = vpack.c.b16 %v422, %v421
          %v436 = vpack.c.b16 %v424, %v423
          %v437 = vpack.c.b16 %v426, %v425
          %v438 = vpack.c.b16 %v428, %v427
          %v439 = vpack.c.b16 %v430, %v429
          %v440 = vpack.c.b16 %v432, %v431
          %449 = vmatprep.subr.bf16.mxu0 0
          %450 = vmatpush1.bf16.msra.mxu0 %v433
          %451 = vmatprep.subr.bf16.mxu0 0
          %452 = vmatpush1.bf16.msra.mxu0 %v434
          %453 = vmatprep.subr.bf16.mxu0 0
          %454 = vmatpush1.bf16.msra.mxu0 %v435
          %455 = vmatprep.subr.bf16.mxu0 0
          %456 = vmatpush1.bf16.msra.mxu0 %v436
          %457 = vmatprep.subr.bf16.mxu0 0
          %458 = vmatpush1.bf16.msra.mxu0 %v437
          %459 = vmatprep.subr.bf16.mxu0 0
          %460 = vmatpush1.bf16.msra.mxu0 %v438
          %461 = vmatprep.subr.bf16.mxu0 0
          %462 = vmatpush1.bf16.msra.mxu0 %v439
          %463 = vmatprep.subr.bf16.mxu0 0
          %464 = vmatpush1.bf16.msra.mxu0 %v440
          %465 = vmatprep.subr.bf16.mxu0 0
          %466 = vmatpush1.bf16.msra.mxu0 0
          %467 = vmatprep.subr.bf16.mxu0 0
          %468 = vmatpush1.bf16.msra.mxu0 0
          %469 = vmatprep.subr.bf16.mxu0 0
          %470 = vmatpush1.bf16.msra.mxu0 0
          %471 = vmatprep.subr.bf16.mxu0 0
          %472 = vmatpush1.bf16.msra.mxu0 0
          %473 = vmatprep.subr.bf16.mxu0 0
          %474 = vmatpush1.bf16.msra.mxu0 0
          %475 = vmatprep.subr.bf16.mxu0 0
          %476 = vmatpush1.bf16.msra.mxu0 0
          %477 = vmatprep.subr.bf16.mxu0 0
          %478 = vmatpush1.bf16.msra.mxu0 0
          %479 = vmatprep.subr.bf16.mxu0 0
          %480 = vmatpush1.bf16.msra.mxu0 0
          %481 = vmatprep.mubr.bf16.mxu0 0
          %482 = vmatmul.mubr.bf16.gmra.mrb[0].mxu0 %v381
          %v483 = vpop.f32.mrb[0].mxu0
          %v484 = vadd.f32 0.0, %v483
          %v485 = vpop.f32.mrb[0].mxu0
          %v486 = vpop.f32.mrb[0].mxu0
          %v487 = vadd.f32 0.0, %v486
          %v488 = vpop.f32.mrb[0].mxu0
          %489 = vdwg.mxu0
          %490 = vst [vmem:[#allocation3] sm:$0xff] %v484
          %491 = vst [vmem:[#allocation3 + $0x8] sm:$0xff] %v487
        $region72: #{tpu_custom_call.1} parent=47 // pred_fallthru
          _
        // Predicated region
        $region73: #{tpu_custom_call.1} parent=47 // pred_check
          %p492 = pneg %p365
        $region74: #{tpu_custom_call.1} parent=47 // pred_check_branch
          %494 = sbr.rel (%p492) target = $region76
        $region75: #{tpu_custom_call.1} parent=47 // pred_region
          %495 = vst [vmem:[#allocation4] sm:$0xff] 0.0
          %496 = vst [vmem:[#allocation4 + $0x8] sm:$0xff] 0.0
        $region76: #{tpu_custom_call.1} parent=47 // pred_fallthru
          _
        %s497 = smul.u32 %s29, 16
        %s498 = scalar_lea.vmem [#allocation3], %s497
        %v499 = vld [vmem:[%s498] sm:$0xff]
        %v500 = vld [vmem:[%s498 + $0x8] sm:$0xff]
        %v501 = vpack.c.bf16 %v500, %v499
        %v502 = vld [vmem:[#allocation4] sm:$0xff]
        %v503 = vld [vmem:[#allocation4 + $0x8] sm:$0xff]
        %v504 = vld [vmem:[#allocation5] sm:$0xf]
        %v505 = vld [vmem:[#allocation5 + $0x4] sm:$0xf]
        %v508 = vunpack.c.l.b16 %v504
        %v509 = vunpack.c.l.b16 %v505
        %v510 = vpack.c.b16 %v509, %v508
        %vm511 = vcmask 130048
        %v513 = vsel %vm511, %v510, 0
        %515 = vmatprep.subr.bf16.mxu0 0
        %516 = vmatpush1.bf16.msra.mxu0 %v501
        %517 = vmatprep.subr.bf16.mxu0 0
        %518 = vmatpush1.bf16.msra.mxu0 0
        %519 = vmatprep.subr.bf16.mxu0 0
        %520 = vmatpush1.bf16.msra.mxu0 0
        %521 = vmatprep.subr.bf16.mxu0 0
        %522 = vmatpush1.bf16.msra.mxu0 0
        %523 = vmatprep.subr.bf16.mxu0 0
        %524 = vmatpush1.bf16.msra.mxu0 0
        %525 = vmatprep.subr.bf16.mxu0 0
        %526 = vmatpush1.bf16.msra.mxu0 0
        %527 = vmatprep.subr.bf16.mxu0 0
        %528 = vmatpush1.bf16.msra.mxu0 0
        %529 = vmatprep.subr.bf16.mxu0 0
        %530 = vmatpush1.bf16.msra.mxu0 0
        %531 = vmatprep.subr.bf16.mxu0 0
        %532 = vmatpush1.bf16.msra.mxu0 0
        %533 = vmatprep.subr.bf16.mxu0 0
        %534 = vmatpush1.bf16.msra.mxu0 0
        %535 = vmatprep.subr.bf16.mxu0 0
        %536 = vmatpush1.bf16.msra.mxu0 0
        %537 = vmatprep.subr.bf16.mxu0 0
        %538 = vmatpush1.bf16.msra.mxu0 0
        %539 = vmatprep.subr.bf16.mxu0 0
        %540 = vmatpush1.bf16.msra.mxu0 0
        %541 = vmatprep.subr.bf16.mxu0 0
        %542 = vmatpush1.bf16.msra.mxu0 0
        %543 = vmatprep.subr.bf16.mxu0 0
        %544 = vmatpush1.bf16.msra.mxu0 0
        %545 = vmatprep.subr.bf16.mxu0 0
        %546 = vmatpush1.bf16.msra.mxu0 0
        %547 = vmatprep.mubr.bf16.mxu0 0
        %548 = vmatmul.mubr.bf16.gmra.mrb[0].mxu0 %v513
        %v549 = vpop.f32.mrb[0].mxu0
        %v550 = vadd.f32 0.0, %v549
        %v551 = vpop.f32.mrb[0].mxu0
        %v552 = vpop.f32.mrb[0].mxu0
        %v553 = vadd.f32 0.0, %v552
        %v554 = vpop.f32.mrb[0].mxu0
        %555 = vdwg.mxu0
        %v556 = vadd.f32 %v502, %v550
        %v557 = vadd.f32 %v503, %v553
        %558 = vst [vmem:[#allocation4] sm:$0xff] %v556
        %559 = vst [vmem:[#allocation4 + $0x8] sm:$0xff] %v557
        %s560 = smul.u32 %s28, 16
        %p561 = scmp.lt.s32.totalorder %s27, 3
        %p562 = pnand %p365, %p561
        %p563 = pneg %p562
        // Predicated region
        $region77: #{tpu_custom_call.1} parent=47 // pred_check
          _
        $region78: #{tpu_custom_call.1} parent=47 // pred_check_branch
          %565 = sbr.rel (%p562) target = $region80
        $region79: #{tpu_custom_call.1} parent=47 // pred_region
          %v566 = vld [vmem:[#allocation4] sm:$0xff]
          %v567 = vld [vmem:[#allocation4 + $0x8] sm:$0xff]
          %s568 = scalar_lea.vmem %s3, %s27
          %v569 = vld [vmem:[%s568] sm:$0x1]
          %v571 = vlaneseq
          %v572 = vshrl.u32 %v571, 7
          %v573 = vsub.s32 0, %v572
          %v574 = vrot.slane %v569, %v573
          %v576 = vadd.f32 %v566, %v574
          %v577 = vadd.f32 %v567, %v574
          %v578 = vmax.f32 %v576, 0.0
          %v579 = vmax.f32 %v577, 0.0
          %s580 = scalar_lea.vmem [#allocation2], %s560
          %581 = vst [vmem:[%s580] sm:$0xff] %v578
          %582 = vst [vmem:[%s580 + $0x8] sm:$0xff] %v579
        $region80: #{tpu_custom_call.1} parent=47 // pred_fallthru
          _
        %p583 = scmp.eq.s32.totalorder %s27, 3
        %p584 = pnand %p365, %p583
        %p585 = pneg %p584
        // Predicated region
        $region81: #{tpu_custom_call.1} parent=47 // pred_check
          _
        $region82: #{tpu_custom_call.1} parent=47 // pred_check_branch
          %587 = sbr.rel (%p584) target = $region84
        $region83: #{tpu_custom_call.1} parent=47 // pred_region
          %v588 = vld [vmem:[#allocation4] sm:$0xff]
          %v589 = vld [vmem:[#allocation4 + $0x8] sm:$0xff]
          %s590 = scalar_lea.vmem %s3, %s27
          %v591 = vld [vmem:[%s590] sm:$0x1]
          %v593 = vlaneseq
          %v594 = vshrl.u32 %v593, 7
          %v595 = vsub.s32 0, %v594
          %v596 = vrot.slane %v591, %v595
          %v598 = vadd.f32 %v588, %v596
          %v599 = vadd.f32 %v589, %v596
          %v600 = vmax.f32 %v598, 0.0
          %v601 = vmax.f32 %v599, 0.0
          %v602 = vld [vmem:[%s360] sm:$0xff]
          %v603 = vld [vmem:[%s360 + $0x8] sm:$0xff]
          %v604 = vmul.f32 %v600, %v602
          %v605 = vmul.f32 %v601, %v603
          %v606 = vpack.c.bf16 %v605, %v604
          %v607 = vld [vmem:[#allocation11] sm:$0xf]
          %v608 = vld [vmem:[#allocation11 + $0x4] sm:$0xf]
          %v609 = vld [vmem:[#allocation11 + $0x8] sm:$0xf]
          %v610 = vld [vmem:[#allocation11 + $0xc] sm:$0xf]
          %v611 = vld [vmem:[#allocation11 + $0x10] sm:$0xf]
          %v612 = vld [vmem:[#allocation11 + $0x14] sm:$0xf]
          %v613 = vld [vmem:[#allocation11 + $0x18] sm:$0xf]
          %v614 = vld [vmem:[#allocation11 + $0x1c] sm:$0xf]
          %v615 = vld [vmem:[#allocation11 + $0x20] sm:$0xf]
          %v616 = vld [vmem:[#allocation11 + $0x24] sm:$0xf]
          %v617 = vld [vmem:[#allocation11 + $0x28] sm:$0xf]
          %v618 = vld [vmem:[#allocation11 + $0x2c] sm:$0xf]
          %v619 = vld [vmem:[#allocation11 + $0x30] sm:$0xf]
          %v620 = vld [vmem:[#allocation11 + $0x34] sm:$0xf]
          %v621 = vld [vmem:[#allocation11 + $0x38] sm:$0xf]
          %v622 = vld [vmem:[#allocation11 + $0x3c] sm:$0xf]
          %v623 = vld [vmem:[%s5] sm:$0x1]
          %v625 = vlaneseq
          %v626 = vshrl.u32 %v625, 7
          %v627 = vsub.s32 0, %v626
          %v628 = vrot.slane %v623, %v627
          %v646 = vunpack.c.l.b16 %v607
          %v647 = vunpack.c.l.b16 %v608
          %v648 = vunpack.c.l.b16 %v609
          %v649 = vunpack.c.l.b16 %v610
          %v650 = vunpack.c.l.b16 %v611
          %v651 = vunpack.c.l.b16 %v612
          %v652 = vunpack.c.l.b16 %v613
          %v653 = vunpack.c.l.b16 %v614
          %v654 = vunpack.c.l.b16 %v615
          %v655 = vunpack.c.l.b16 %v616
          %v656 = vunpack.c.l.b16 %v617
          %v657 = vunpack.c.l.b16 %v618
          %v658 = vunpack.c.l.b16 %v619
          %v659 = vunpack.c.l.b16 %v620
          %v660 = vunpack.c.l.b16 %v621
          %v661 = vunpack.c.l.b16 %v622
          %v662 = vpack.c.b16 %v647, %v646
          %v663 = vpack.c.b16 %v649, %v648
          %v664 = vpack.c.b16 %v651, %v650
          %v665 = vpack.c.b16 %v653, %v652
          %v666 = vpack.c.b16 %v655, %v654
          %v667 = vpack.c.b16 %v657, %v656
          %v668 = vpack.c.b16 %v659, %v658
          %v669 = vpack.c.b16 %v661, %v660
          %678 = vmatprep.subr.bf16.mxu0 0
          %679 = vmatpush1.bf16.msra.mxu0 %v662
          %680 = vmatprep.subr.bf16.mxu0 0
          %681 = vmatpush1.bf16.msra.mxu0 %v663
          %682 = vmatprep.subr.bf16.mxu0 0
          %683 = vmatpush1.bf16.msra.mxu0 %v664
          %684 = vmatprep.subr.bf16.mxu0 0
          %685 = vmatpush1.bf16.msra.mxu0 %v665
          %686 = vmatprep.subr.bf16.mxu0 0
          %687 = vmatpush1.bf16.msra.mxu0 %v666
          %688 = vmatprep.subr.bf16.mxu0 0
          %689 = vmatpush1.bf16.msra.mxu0 %v667
          %690 = vmatprep.subr.bf16.mxu0 0
          %691 = vmatpush1.bf16.msra.mxu0 %v668
          %692 = vmatprep.subr.bf16.mxu0 0
          %693 = vmatpush1.bf16.msra.mxu0 %v669
          %694 = vmatprep.subr.bf16.mxu0 0
          %695 = vmatpush1.bf16.msra.mxu0 0
          %696 = vmatprep.subr.bf16.mxu0 0
          %697 = vmatpush1.bf16.msra.mxu0 0
          %698 = vmatprep.subr.bf16.mxu0 0
          %699 = vmatpush1.bf16.msra.mxu0 0
          %700 = vmatprep.subr.bf16.mxu0 0
          %701 = vmatpush1.bf16.msra.mxu0 0
          %702 = vmatprep.subr.bf16.mxu0 0
          %703 = vmatpush1.bf16.msra.mxu0 0
          %704 = vmatprep.subr.bf16.mxu0 0
          %705 = vmatpush1.bf16.msra.mxu0 0
          %706 = vmatprep.subr.bf16.mxu0 0
          %707 = vmatpush1.bf16.msra.mxu0 0
          %708 = vmatprep.subr.bf16.mxu0 0
          %709 = vmatpush1.bf16.msra.mxu0 0
          %710 = vmatprep.mubr.bf16.mxu0 0
          %711 = vmatmul.mubr.bf16.gmra.mrb[0].mxu0 %v606
          %v712 = vpop.f32.mrb[0].mxu0
          %v713 = vadd.f32 %v628, %v712
          %v714 = vpop.f32.mrb[0].mxu0
          %v715 = vpop.f32.mrb[0].mxu0
          %v716 = vadd.f32 %v628, %v715
          %v717 = vpop.f32.mrb[0].mxu0
          %718 = vdwg.mxu0
          %719 = vst [vmem:[#allocation13] sm:$0xff] %v713
          %720 = vst [vmem:[#allocation13 + $0x8] sm:$0xff] %v716
        $region84: #{tpu_custom_call.1} parent=47 // pred_fallthru
          _
        // Predicated region
        $region85: #{tpu_custom_call.1} parent=47 // pred_check
          %p721 = pneg %p218
        $region86: #{tpu_custom_call.1} parent=47 // pred_check_branch
          %723 = sbr.rel (%p721) target = $region88
        $region87: #{tpu_custom_call.1} parent=47 // pred_region
          %s724 = smul.u32 2, %s28
          %s726 = ssub.s32 256, 256
          %727 = vsyncadd [#allocation7], %s726
          %s728 = smul.addr %s724, 128
          %s729 = scalar_lea.hbm %s7, %s728
          %s730 = sshll.u32 [#allocation13], 4
          %s731 = int_to_ptr.vmem [resolvable:$true] %s730
          %736 = dma.vmem_to_hbm [thread:$0]  %s731, 256, %s729, [#allocation7], 128, 128, 8
        $region88: #{tpu_custom_call.1} parent=47 // pred_fallthru
          _
        // Predicated region
        $region89: #{tpu_custom_call.1} parent=47 // pred_check
          %p737 = pneg %p218
        $region90: #{tpu_custom_call.1} parent=47 // pred_check_branch
          %739 = sbr.rel (%p737) target = $region92
        $region91: #{tpu_custom_call.1} parent=47 // pred_region
          %740 = dma.done [#allocation7], 256
        $region92: #{tpu_custom_call.1} parent=47 // pred_fallthru
          _
      $region48: #{tpu_custom_call.1} parent=5 // pred_fallthru
        _
      %p741 = scmp.le.s32.totalorder 2, %s17
      // Predicated region
      $region93: #{tpu_custom_call.1} parent=5 // pred_check
        %p742 = pneg %p741
      $region94: #{tpu_custom_call.1} parent=5 // pred_check_branch
        %744 = sbr.rel (%p742) target = $region96
      $region95: #{tpu_custom_call.1} parent=5 // pred_region
        %s745 = ssub.s32 %s17, 2
      $region96: #{tpu_custom_call.1} parent=5 // pred_fallthru
        _
    $region6: #{tpu_custom_call.1} parent=1 // loop_footer
      %s21 = sadd.s32 1, %s17
    $region7: #{tpu_custom_call.1} parent=1 // loop_footer_branch
      %16 = sbr.rel target = $region3
    $region8: #{tpu_custom_call.1} parent=1 // loop_exit
      _
    %746 = vsyncpa [#allocation6], 1
    %s747 = scalar_lea.sflag [#allocation6], 1
    %748 = vsyncpa %s747, 1
    %749 = vsyncpa [#allocation9], 1
    %750 = vsyncpa [#allocation12], 1
    %751 = vsyncpa [#allocation7], 1
    %s752 = scalar_lea.sflag [#allocation7], 1
    %753 = vsyncpa %s752, 1

</llo_original>
